<compile_context>
chip_gen: v5e
topology: v5e:2x2
jax: 0.10.0
libtpu: 0.0.40
codegen_flags: <defaults>
</compile_context>

<pallas_src>
import functools

import jax
import jax.numpy as jnp
from jax.experimental import pallas as pl
from jax.experimental.pallas import tpu as pltpu

HIDDEN = 256


def _round_up(n, m):
    return ((n + m - 1) // m) * m


# ----------------------------------------------------------------------------
# Pallas kernel: fused forward pass for one batch tile (batch on lane axis)
# ----------------------------------------------------------------------------
def net_kernel(x_ref, packed_ref, w2_ref, w3_ref, w5_ref, b5_ref, o_ref):
    f32 = jnp.float32
    bf16 = jnp.bfloat16

    x = x_ref[...]                               # (1, TN)  f32, batch on lanes
    p = packed_ref[...]                          # (256, 4) f32: [w1 | b1 | b2 | b3]
    w1 = p[:, 0:1]
    b1 = p[:, 1:2]
    b2 = p[:, 2:3]
    b3 = p[:, 3:4]

    # layer1 + relu: K=1 contraction => VPU broadcast outer product (f32 math,
    # v5e VPU has no bf16); emit bf16 so layer2 consumes a bf16 LHS directly.
    h = jnp.maximum(w1 * x + b1, 0.0).astype(bf16)            # (256, TN) bf16

    # layer2 + relu: bf16 MXU, f32 accumulation.
    h = jnp.dot(w2_ref[...], h, preferred_element_type=f32) + b2
    h = jnp.maximum(h, 0.0).astype(bf16)                      # (256, TN) bf16

    # layer3 + relu: bf16 MXU, f32 accumulation.
    h = jnp.dot(w3_ref[...], h, preferred_element_type=f32) + b3
    h = jnp.maximum(h, 0.0).astype(bf16)                      # (256, TN) bf16

    # layer5 (no activation): (1,256) @ (256,TN) -> lane-dense (1, TN) f32.
    # (Optional VPU+XLU head only if a bundle dump shows MXU drain stalls.)
    o_ref[...] = (jnp.dot(w5_ref[...], h, preferred_element_type=f32)
                  + b5_ref[0])


# ----------------------------------------------------------------------------
# Wrapper: batch grid, resident bf16 weights, lane-dense I/O
# ----------------------------------------------------------------------------
@functools.partial(jax.jit, static_argnames=("tn",))
def net_forward(x, params, tn=4096):
    """x: (N, 1) float32 -> (N, 1) float32."""
    n = x.shape[0]
    xt = x.reshape(1, n)                       # (N,1) -> (1,N), same data order

    n_pad128 = _round_up(n, 128)               # lane-dense tile, >=128 lanes
    tn_eff = min(tn, n_pad128)
    if n_pad128 > 128:
        # Ensure >= 2 grid steps for large batches so v7x's two TensorCores
        # both get a share of the "parallel" batch axis.
        tn_eff = min(tn_eff, max(128, _round_up(pl.cdiv(n_pad128, 2), 128)))
    n_pad = _round_up(n, tn_eff)
    if n_pad != n:
        xt = jnp.pad(xt, ((0, 0), (0, n_pad - n)))
    grid = (n_pad // tn_eff,)

    # bf16 weights for the MXU contractions (f32 accumulate inside the kernel).
    w2 = params["w2"].astype(jnp.bfloat16)
    w3 = params["w3"].astype(jnp.bfloat16)
    w5 = params["w5"].astype(jnp.bfloat16)
    # Pack the (256,1) column vectors into one small f32 slab: one DMA and one
    # padded VMEM tile instead of four.
    packed = jnp.concatenate(
        [params["w1"], params["b1"], params["b2"], params["b3"]], axis=1)
    b5 = params["b5"].reshape(1)               # SMEM scalar

    def resident(shape):
        # Constant block index across the batch grid => fetched once, stays
        # VMEM-resident for the whole kernel.
        return pl.BlockSpec(shape, lambda i: (0, 0))

    flops = 2 * n_pad * (HIDDEN + HIDDEN * HIDDEN + HIDDEN * HIDDEN + HIDDEN)
    param_bytes = (int(packed.size) * 4 + int(b5.size) * 4
                   + (int(w2.size) + int(w3.size) + int(w5.size)) * 2)
    cost = pl.CostEstimate(flops=flops, transcendentals=0,
                           bytes_accessed=4 * n_pad * 2 + param_bytes)

    out_t = pl.pallas_call(
        net_kernel,
        out_shape=jax.ShapeDtypeStruct((1, n_pad), jnp.float32),
        grid=grid,
        in_specs=[
            pl.BlockSpec((1, tn_eff), lambda i: (0, i)),        # x moving tile
            resident(packed.shape),                             # [w1|b1|b2|b3]
            resident(w2.shape),
            resident(w3.shape),
            resident(w5.shape),
            pl.BlockSpec(memory_space=pltpu.MemorySpace.SMEM),  # b5 scalar
        ],
        out_specs=pl.BlockSpec((1, tn_eff), lambda i: (0, i)),
        compiler_params=pltpu.CompilerParams(
            dimension_semantics=("parallel",),
            vmem_limit_bytes=32 * 1024 * 1024),
        cost_estimate=cost,
    )(xt, packed, w2, w3, w5, b5)

    return out_t[:, :n].reshape(n, 1)


# ----------------------------------------------------------------------------
# Deterministic parameter init (xavier_normal weights, zero biases)
# ----------------------------------------------------------------------------
def xavier_normal(key, shape):
    fan_out, fan_in = shape                    # torch Linear weight is (out, in)
    std = (2.0 / (fan_in + fan_out)) ** 0.5
    return std * jax.random.normal(key, shape, dtype=jnp.float32)


def init_params(key):
    k1, k2, k3, k5 = jax.random.split(key, 4)
    # Weights torch-native (out, in); biases as (out, 1) columns so they
    # broadcast over the lane (batch) axis inside the kernel.
    return {
        "w1": xavier_normal(k1, (HIDDEN, 1)),
        "b1": jnp.zeros((HIDDEN, 1), jnp.float32),
        "w2": xavier_normal(k2, (HIDDEN, HIDDEN)),
        "b2": jnp.zeros((HIDDEN, 1), jnp.float32),
        "w3": xavier_normal(k3, (HIDDEN, HIDDEN)),
        "b3": jnp.zeros((HIDDEN, 1), jnp.float32),
        "w5": xavier_normal(k5, (1, HIDDEN)),
        "b5": jnp.zeros((1, 1), jnp.float32),
    }


# Pure-JAX f32 reference for correctness check.
def reference_forward(x, p):
    h = jnp.maximum(x @ p["w1"].T + p["b1"].T, 0.0)
    h = jnp.maximum(h @ p["w2"].T + p["b2"].T, 0.0)
    h = jnp.maximum(h @ p["w3"].T + p["b3"].T, 0.0)
    return h @ p["w5"].T + p["b5"].T


if __name__ == "__main__":
    key = jax.random.PRNGKey(0)
    pkey, xkey = jax.random.split(key)
    params = init_params(pkey)

    # Small batch of scalar inputs (Linear(1, 256) => x is (N, 1)).
    N = 32
    x = jax.random.normal(xkey, (N, 1), dtype=jnp.float32)

    out = jax.block_until_ready(net_forward(x, params))
    ref = reference_forward(x, params)
    assert out.shape == (N, 1)
    # bf16 matmuls / activations (f32 accumulate) => loosened tolerance.
    assert jnp.allclose(out, ref, atol=1e-2, rtol=2e-2), "mismatch vs reference"

    # Also exercise the multi-tile (grid > 1) pipelined path.
    N2 = 2500
    x2 = jax.random.normal(jax.random.PRNGKey(1), (N2, 1), dtype=jnp.float32)
    out2 = jax.block_until_ready(net_forward(x2, params))
    ref2 = reference_forward(x2, params)
    assert out2.shape == (N2, 1)
    assert jnp.allclose(out2, ref2, atol=1e-2, rtol=2e-2), "mismatch (grid>1)"

    print("KERNEL_OK")
</pallas_src>

<mosaic_0001>
module attributes {stable_mosaic.version = 11 : i64} {
  func.func @net_kernel(%arg0: i32, %arg1: memref<1x128xf32, #tpu.memory_space<vmem>>, %arg2: memref<256x4xf32, #tpu.memory_space<vmem>>, %arg3: memref<256x256xbf16, #tpu.memory_space<vmem>>, %arg4: memref<256x256xbf16, #tpu.memory_space<vmem>>, %arg5: memref<1x256xbf16, #tpu.memory_space<vmem>>, %arg6: memref<1xf32, #tpu.memory_space<smem>>, %arg7: memref<1x128xf32, #tpu.memory_space<vmem>>) attributes {dimension_semantics = [#tpu.dimension_semantics<parallel>], iteration_bounds = array<i64: 1>, scalar_prefetch = 0 : i64, scratch_operands = 0 : i64, tpu.core_type = #tpu.core_type<tc>, window_params = [{transform_indices = @transform_0, window_bounds = array<i64: 1, 128>}, {pipeline_mode = #tpu.pipeline_mode<synchronous>, transform_indices = @transform_1, window_bounds = array<i64: 256, 4>}, {pipeline_mode = #tpu.pipeline_mode<synchronous>, transform_indices = @transform_2, window_bounds = array<i64: 256, 256>}, {pipeline_mode = #tpu.pipeline_mode<synchronous>, transform_indices = @transform_3, window_bounds = array<i64: 256, 256>}, {pipeline_mode = #tpu.pipeline_mode<synchronous>, transform_indices = @transform_4, window_bounds = array<i64: 1, 256>}, {transform_indices = @transform_5, window_bounds = array<i64: 1>}, {transform_indices = @transform_6, window_bounds = array<i64: 1, 128>}]} {
    %c0 = arith.constant 0 : index
    %c0_0 = arith.constant 0 : index
    %0 = vector.load %arg1[%c0, %c0_0] : memref<1x128xf32, #tpu.memory_space<vmem>>, vector<1x128xf32>
    %c0_1 = arith.constant 0 : index
    %c0_2 = arith.constant 0 : index
    %1 = vector.load %arg2[%c0_1, %c0_2] : memref<256x4xf32, #tpu.memory_space<vmem>>, vector<256x4xf32>
    %2 = vector.extract_strided_slice %1 {offsets = [0, 0], sizes = [256, 1], strides = [1, 1]} : vector<256x4xf32> to vector<256x1xf32>
    %3 = vector.extract_strided_slice %1 {offsets = [0, 1], sizes = [256, 1], strides = [1, 1]} : vector<256x4xf32> to vector<256x1xf32>
    %4 = vector.extract_strided_slice %1 {offsets = [0, 2], sizes = [256, 1], strides = [1, 1]} : vector<256x4xf32> to vector<256x1xf32>
    %5 = vector.extract_strided_slice %1 {offsets = [0, 3], sizes = [256, 1], strides = [1, 1]} : vector<256x4xf32> to vector<256x1xf32>
    %6 = vector.broadcast %2 : vector<256x1xf32> to vector<256x128xf32>
    %7 = vector.broadcast %0 : vector<1x128xf32> to vector<256x128xf32>
    %8 = arith.mulf %6, %7 : vector<256x128xf32>
    %9 = vector.broadcast %3 : vector<256x1xf32> to vector<256x128xf32>
    %10 = arith.addf %8, %9 : vector<256x128xf32>
    %cst = arith.constant 0.000000e+00 : f32
    %11 = vector.broadcast %cst : f32 to vector<256x128xf32>
    %12 = arith.maximumf %10, %11 : vector<256x128xf32>
    %13 = arith.truncf %12 : vector<256x128xf32> to vector<256x128xbf16>
    %c0_3 = arith.constant 0 : index
    %c0_4 = arith.constant 0 : index
    %14 = vector.load %arg3[%c0_3, %c0_4] : memref<256x256xbf16, #tpu.memory_space<vmem>>, vector<256x256xbf16>
    %cst_5 = arith.constant dense<0.000000e+00> : vector<256x128xf32>
    %15 = tpu.matmul %14, %13, %cst_5 {dimension_numbers = #tpu.dot_dimension_numbers<[1], [0], [0], [1], [0, 0, 1, 1], [], []>} : vector<256x256xbf16>, vector<256x128xbf16>, vector<256x128xf32> -> vector<256x128xf32>
    %16 = vector.broadcast %4 : vector<256x1xf32> to vector<256x128xf32>
    %17 = arith.addf %15, %16 : vector<256x128xf32>
    %cst_6 = arith.constant 0.000000e+00 : f32
    %18 = vector.broadcast %cst_6 : f32 to vector<256x128xf32>
    %19 = arith.maximumf %17, %18 : vector<256x128xf32>
    %20 = arith.truncf %19 : vector<256x128xf32> to vector<256x128xbf16>
    %c0_7 = arith.constant 0 : index
    %c0_8 = arith.constant 0 : index
    %21 = vector.load %arg4[%c0_7, %c0_8] : memref<256x256xbf16, #tpu.memory_space<vmem>>, vector<256x256xbf16>
    %cst_9 = arith.constant dense<0.000000e+00> : vector<256x128xf32>
    %22 = tpu.matmul %21, %20, %cst_9 {dimension_numbers = #tpu.dot_dimension_numbers<[1], [0], [0], [1], [0, 0, 1, 1], [], []>} : vector<256x256xbf16>, vector<256x128xbf16>, vector<256x128xf32> -> vector<256x128xf32>
    %23 = vector.broadcast %5 : vector<256x1xf32> to vector<256x128xf32>
    %24 = arith.addf %22, %23 : vector<256x128xf32>
    %cst_10 = arith.constant 0.000000e+00 : f32
    %25 = vector.broadcast %cst_10 : f32 to vector<256x128xf32>
    %26 = arith.maximumf %24, %25 : vector<256x128xf32>
    %27 = arith.truncf %26 : vector<256x128xf32> to vector<256x128xbf16>
    %c0_11 = arith.constant 0 : index
    %c0_12 = arith.constant 0 : index
    %28 = vector.load %arg5[%c0_11, %c0_12] : memref<1x256xbf16, #tpu.memory_space<vmem>>, vector<1x256xbf16>
    %cst_13 = arith.constant dense<0.000000e+00> : vector<1x128xf32>
    %29 = tpu.matmul %28, %27, %cst_13 {dimension_numbers = #tpu.dot_dimension_numbers<[1], [0], [0], [1], [0, 0, 1, 1], [], []>} : vector<1x256xbf16>, vector<256x128xbf16>, vector<1x128xf32> -> vector<1x128xf32>
    %c0_14 = arith.constant 0 : index
    %30 = memref.load %arg6[%c0_14] : memref<1xf32, #tpu.memory_space<smem>>
    %31 = vector.broadcast %30 : f32 to vector<1x128xf32>
    %32 = arith.addf %29, %31 : vector<1x128xf32>
    %c0_15 = arith.constant 0 : index
    %c0_16 = arith.constant 0 : index
    %33 = vector.load %arg7[%c0_15, %c0_16] : memref<1x128xf32, #tpu.memory_space<vmem>>, vector<1x128xf32>
    tpu.vector_store %arg7[%c0_15, %c0_16], %32 {strides = array<i32>} : memref<1x128xf32, #tpu.memory_space<vmem>>, vector<1x128xf32>,
    return
  }
  func.func @transform_0(%arg0: i32) -> (i32, i32) {
    %c0_i32 = arith.constant 0 : i32
    %c0_i32_0 = arith.constant 0 : i32
    return %c0_i32, %arg0 : i32, i32
  }
  func.func @transform_1(%arg0: i32) -> (i32, i32) {
    %c0_i32 = arith.constant 0 : i32
    %c0_i32_0 = arith.constant 0 : i32
    %c0_i32_1 = arith.constant 0 : i32
    return %c0_i32, %c0_i32_0 : i32, i32
  }
  func.func @transform_2(%arg0: i32) -> (i32, i32) {
    %c0_i32 = arith.constant 0 : i32
    %c0_i32_0 = arith.constant 0 : i32
    %c0_i32_1 = arith.constant 0 : i32
    return %c0_i32, %c0_i32_0 : i32, i32
  }
  func.func @transform_3(%arg0: i32) -> (i32, i32) {
    %c0_i32 = arith.constant 0 : i32
    %c0_i32_0 = arith.constant 0 : i32
    %c0_i32_1 = arith.constant 0 : i32
    return %c0_i32, %c0_i32_0 : i32, i32
  }
  func.func @transform_4(%arg0: i32) -> (i32, i32) {
    %c0_i32 = arith.constant 0 : i32
    %c0_i32_0 = arith.constant 0 : i32
    %c0_i32_1 = arith.constant 0 : i32
    return %c0_i32, %c0_i32_0 : i32, i32
  }
  func.func @transform_5(%arg0: i32) -> i32 {
    %c0_i32 = arith.constant 0 : i32
    %c0_i32_0 = arith.constant 0 : i32
    return %c0_i32 : i32
  }
  func.func @transform_6(%arg0: i32) -> (i32, i32) {
    %c0_i32 = arith.constant 0 : i32
    %c0_i32_0 = arith.constant 0 : i32
    return %c0_i32, %arg0 : i32, i32
  }
}

</mosaic_0001>

<llo_original>
// kernel: net_forward.1
$region0: #{net_forward.1}
  #allocation0 [shape = 'u32[]', space=smem, size = 0x4, offset = 0x4, fixed_abs, tag = 'smem constant byte address 0x4 - core index']
  #allocation1 [shape = 'u32[72,128]{1,0:T(1,128)}', space=vmem, size = 0x9000, scoped, tag = 'internal scratch']
  #allocation2 [shape = 'f32[1]{0:T(128)S(6)}', space=smem, size = 0x200, scoped, tag = 'scoped memory for net_forward.1']
  %s0 = inlined_call_operand.vmem [shape: f32[1,128], index: 0, kind: input, shape index: {}]
  %s1 = inlined_call_operand.vmem [shape: f32[256,4], index: 1, kind: input, shape index: {}]
  %s2 = inlined_call_operand.vmem [shape: bf16[256,256], index: 2, kind: input, shape index: {}]
  %s3 = inlined_call_operand.vmem [shape: bf16[256,256], index: 3, kind: input, shape index: {}]
  %s4 = inlined_call_operand.vmem [shape: bf16[1,256], index: 4, kind: input, shape index: {}]
  %s5 = inlined_call_operand.<no memory space> [shape: f32[1], index: 5, kind: input, shape index: {}]
  %s6 = inlined_call_operand.vmem [shape: f32[1,128], index: 6, kind: output, shape index: {}]
  %s7 = sld [smem:[#allocation0]]
  $region34: #{net_forward.1} parent=0
    _
  %s9 = ssub.s32 1, %s7
  %s10 = scalar_select 0, %s9, %s7
  %11 = sst [smem:[#allocation2]] %s5
  // Predicated region
  $region2: #{net_forward.1} parent=0 // pred_check
    _
  $region3: #{net_forward.1} parent=0 // pred_check_branch
    %13 = sbr.rel (0) target = $region5
  $region4: #{net_forward.1} parent=0 // pred_region
    _
  $region5: #{net_forward.1} parent=0 // pred_fallthru
    _
  // Predicated region
  $region6: #{net_forward.1} parent=0 // pred_check
    _
  $region7: #{net_forward.1} parent=0 // pred_check_branch
    %15 = sbr.rel (0) target = $region9
  $region8: #{net_forward.1} parent=0 // pred_region
    _
  $region9: #{net_forward.1} parent=0 // pred_fallthru
    _
  // Predicated region
  $region10: #{net_forward.1} parent=0 // pred_check
    _
  $region11: #{net_forward.1} parent=0 // pred_check_branch
    %17 = sbr.rel (0) target = $region13
  $region12: #{net_forward.1} parent=0 // pred_region
    _
  $region13: #{net_forward.1} parent=0 // pred_fallthru
    _
  // Predicated region
  $region14: #{net_forward.1} parent=0 // pred_check
    _
  $region15: #{net_forward.1} parent=0 // pred_check_branch
    %19 = sbr.rel (0) target = $region17
  $region16: #{net_forward.1} parent=0 // pred_region
    _
  $region17: #{net_forward.1} parent=0 // pred_fallthru
    _
  // Predicated region
  $region18: #{net_forward.1} parent=0 // pred_check
    _
  $region19: #{net_forward.1} parent=0 // pred_check_branch
    %21 = sbr.rel (0) target = $region21
  $region20: #{net_forward.1} parent=0 // pred_region
    _
  $region21: #{net_forward.1} parent=0 // pred_fallthru
    _
  // Predicated region
  $region22: #{net_forward.1} parent=0 // pred_check
    _
  $region23: #{net_forward.1} parent=0 // pred_check_branch
    %23 = sbr.rel (0) target = $region25
  $region24: #{net_forward.1} parent=0 // pred_region
    _
  $region25: #{net_forward.1} parent=0 // pred_fallthru
    _
  %v24 = vld [vmem:[%s0] sm:$0x1]
  %v25 = vld [vmem:[%s1] sm:$0xff]
  %v26 = vld [vmem:[%s1 + $0x8] sm:$0xff]
  %v27 = vld [vmem:[%s1 + $0x10] sm:$0xff]
  %v28 = vld [vmem:[%s1 + $0x18] sm:$0xff]
  %v29 = vld [vmem:[%s1 + $0x20] sm:$0xff]
  %v30 = vld [vmem:[%s1 + $0x28] sm:$0xff]
  %v31 = vld [vmem:[%s1 + $0x30] sm:$0xff]
  %v32 = vld [vmem:[%s1 + $0x38] sm:$0xff]
  %v33 = vld [vmem:[%s1 + $0x40] sm:$0xff]
  %v34 = vld [vmem:[%s1 + $0x48] sm:$0xff]
  %v35 = vld [vmem:[%s1 + $0x50] sm:$0xff]
  %v36 = vld [vmem:[%s1 + $0x58] sm:$0xff]
  %v37 = vld [vmem:[%s1 + $0x60] sm:$0xff]
  %v38 = vld [vmem:[%s1 + $0x68] sm:$0xff]
  %v39 = vld [vmem:[%s1 + $0x70] sm:$0xff]
  %v40 = vld [vmem:[%s1 + $0x78] sm:$0xff]
  %v41 = vld [vmem:[%s1 + $0x80] sm:$0xff]
  %v42 = vld [vmem:[%s1 + $0x88] sm:$0xff]
  %v43 = vld [vmem:[%s1 + $0x90] sm:$0xff]
  %v44 = vld [vmem:[%s1 + $0x98] sm:$0xff]
  %v45 = vld [vmem:[%s1 + $0xa0] sm:$0xff]
  %v46 = vld [vmem:[%s1 + $0xa8] sm:$0xff]
  %v47 = vld [vmem:[%s1 + $0xb0] sm:$0xff]
  %v48 = vld [vmem:[%s1 + $0xb8] sm:$0xff]
  %v49 = vld [vmem:[%s1 + $0xc0] sm:$0xff]
  %v50 = vld [vmem:[%s1 + $0xc8] sm:$0xff]
  %v51 = vld [vmem:[%s1 + $0xd0] sm:$0xff]
  %v52 = vld [vmem:[%s1 + $0xd8] sm:$0xff]
  %v53 = vld [vmem:[%s1 + $0xe0] sm:$0xff]
  %v54 = vld [vmem:[%s1 + $0xe8] sm:$0xff]
  %v55 = vld [vmem:[%s1 + $0xf0] sm:$0xff]
  %v56 = vld [vmem:[%s1 + $0xf8] sm:$0xff]
  %58 = vset.pattern.permute.xlu0 0
  %59 = vperm.xlu0 %58, %v25
  %v60 = vpop.permute.xlu0 %59
  %63 = vset.pattern.permute.xlu0 0
  %64 = vperm.xlu0 %63, %v26
  %v65 = vpop.permute.xlu0 %64
  %68 = vset.pattern.permute.xlu0 0
  %69 = vperm.xlu0 %68, %v27
  %v70 = vpop.permute.xlu0 %69
  %73 = vset.pattern.permute.xlu0 0
  %74 = vperm.xlu0 %73, %v28
  %v75 = vpop.permute.xlu0 %74
  %78 = vset.pattern.permute.xlu0 0
  %79 = vperm.xlu0 %78, %v29
  %v80 = vpop.permute.xlu0 %79
  %83 = vset.pattern.permute.xlu0 0
  %84 = vperm.xlu0 %83, %v30
  %v85 = vpop.permute.xlu0 %84
  %88 = vset.pattern.permute.xlu0 0
  %89 = vperm.xlu0 %88, %v31
  %v90 = vpop.permute.xlu0 %89
  %93 = vset.pattern.permute.xlu0 0
  %94 = vperm.xlu0 %93, %v32
  %v95 = vpop.permute.xlu0 %94
  %98 = vset.pattern.permute.xlu0 0
  %99 = vperm.xlu0 %98, %v33
  %v100 = vpop.permute.xlu0 %99
  %103 = vset.pattern.permute.xlu0 0
  %104 = vperm.xlu0 %103, %v34
  %v105 = vpop.permute.xlu0 %104
  %108 = vset.pattern.permute.xlu0 0
  %109 = vperm.xlu0 %108, %v35
  %v110 = vpop.permute.xlu0 %109
  %113 = vset.pattern.permute.xlu0 0
  %114 = vperm.xlu0 %113, %v36
  %v115 = vpop.permute.xlu0 %114
  %118 = vset.pattern.permute.xlu0 0
  %119 = vperm.xlu0 %118, %v37
  %v120 = vpop.permute.xlu0 %119
  %123 = vset.pattern.permute.xlu0 0
  %124 = vperm.xlu0 %123, %v38
  %v125 = vpop.permute.xlu0 %124
  %128 = vset.pattern.permute.xlu0 0
  %129 = vperm.xlu0 %128, %v39
  %v130 = vpop.permute.xlu0 %129
  %133 = vset.pattern.permute.xlu0 0
  %134 = vperm.xlu0 %133, %v40
  %v135 = vpop.permute.xlu0 %134
  %138 = vset.pattern.permute.xlu0 0
  %139 = vperm.xlu0 %138, %v41
  %v140 = vpop.permute.xlu0 %139
  %143 = vset.pattern.permute.xlu0 0
  %144 = vperm.xlu0 %143, %v42
  %v145 = vpop.permute.xlu0 %144
  %148 = vset.pattern.permute.xlu0 0
  %149 = vperm.xlu0 %148, %v43
  %v150 = vpop.permute.xlu0 %149
  %153 = vset.pattern.permute.xlu0 0
  %154 = vperm.xlu0 %153, %v44
  %v155 = vpop.permute.xlu0 %154
  %158 = vset.pattern.permute.xlu0 0
  %159 = vperm.xlu0 %158, %v45
  %v160 = vpop.permute.xlu0 %159
  %163 = vset.pattern.permute.xlu0 0
  %164 = vperm.xlu0 %163, %v46
  %v165 = vpop.permute.xlu0 %164
  %168 = vset.pattern.permute.xlu0 0
  %169 = vperm.xlu0 %168, %v47
  %v170 = vpop.permute.xlu0 %169
  %173 = vset.pattern.permute.xlu0 0
  %174 = vperm.xlu0 %173, %v48
  %v175 = vpop.permute.xlu0 %174
  %178 = vset.pattern.permute.xlu0 0
  %179 = vperm.xlu0 %178, %v49
  %v180 = vpop.permute.xlu0 %179
  %183 = vset.pattern.permute.xlu0 0
  %184 = vperm.xlu0 %183, %v50
  %v185 = vpop.permute.xlu0 %184
  %188 = vset.pattern.permute.xlu0 0
  %189 = vperm.xlu0 %188, %v51
  %v190 = vpop.permute.xlu0 %189
  %193 = vset.pattern.permute.xlu0 0
  %194 = vperm.xlu0 %193, %v52
  %v195 = vpop.permute.xlu0 %194
  %198 = vset.pattern.permute.xlu0 0
  %199 = vperm.xlu0 %198, %v53
  %v200 = vpop.permute.xlu0 %199
  %203 = vset.pattern.permute.xlu0 0
  %204 = vperm.xlu0 %203, %v54
  %v205 = vpop.permute.xlu0 %204
  %208 = vset.pattern.permute.xlu0 0
  %209 = vperm.xlu0 %208, %v55
  %v210 = vpop.permute.xlu0 %209
  %213 = vset.pattern.permute.xlu0 0
  %214 = vperm.xlu0 %213, %v56
  %v215 = vpop.permute.xlu0 %214
  %v218 = vperm.slane %v24, 0
  %v220 = vmul.f32 %v60, %v218
  %v221 = vmul.f32 %v65, %v218
  %v222 = vmul.f32 %v70, %v218
  %v223 = vmul.f32 %v75, %v218
  %v224 = vmul.f32 %v80, %v218
  %v225 = vmul.f32 %v85, %v218
  %v226 = vmul.f32 %v90, %v218
  %v227 = vmul.f32 %v95, %v218
  %v228 = vmul.f32 %v100, %v218
  %v229 = vmul.f32 %v105, %v218
  %v230 = vmul.f32 %v110, %v218
  %v231 = vmul.f32 %v115, %v218
  %v232 = vmul.f32 %v120, %v218
  %v233 = vmul.f32 %v125, %v218
  %v234 = vmul.f32 %v130, %v218
  %v235 = vmul.f32 %v135, %v218
  %v236 = vmul.f32 %v140, %v218
  %v237 = vmul.f32 %v145, %v218
  %v238 = vmul.f32 %v150, %v218
  %v239 = vmul.f32 %v155, %v218
  %v240 = vmul.f32 %v160, %v218
  %v241 = vmul.f32 %v165, %v218
  %v242 = vmul.f32 %v170, %v218
  %v243 = vmul.f32 %v175, %v218
  %v244 = vmul.f32 %v180, %v218
  %v245 = vmul.f32 %v185, %v218
  %v246 = vmul.f32 %v190, %v218
  %v247 = vmul.f32 %v195, %v218
  %v248 = vmul.f32 %v200, %v218
  %v249 = vmul.f32 %v205, %v218
  %v250 = vmul.f32 %v210, %v218
  %v251 = vmul.f32 %v215, %v218
  %252 = vset.pattern.permute.xlu0 1
  %253 = vperm.xlu0 %252, %v25
  %v254 = vpop.permute.xlu0 %253
  %256 = vset.pattern.permute.xlu0 1
  %257 = vperm.xlu0 %256, %v26
  %v258 = vpop.permute.xlu0 %257
  %260 = vset.pattern.permute.xlu0 1
  %261 = vperm.xlu0 %260, %v27
  %v262 = vpop.permute.xlu0 %261
  %264 = vset.pattern.permute.xlu0 1
  %265 = vperm.xlu0 %264, %v28
  %v266 = vpop.permute.xlu0 %265
  %268 = vset.pattern.permute.xlu0 1
  %269 = vperm.xlu0 %268, %v29
  %v270 = vpop.permute.xlu0 %269
  %272 = vset.pattern.permute.xlu0 1
  %273 = vperm.xlu0 %272, %v30
  %v274 = vpop.permute.xlu0 %273
  %276 = vset.pattern.permute.xlu0 1
  %277 = vperm.xlu0 %276, %v31
  %v278 = vpop.permute.xlu0 %277
  %280 = vset.pattern.permute.xlu0 1
  %281 = vperm.xlu0 %280, %v32
  %v282 = vpop.permute.xlu0 %281
  %284 = vset.pattern.permute.xlu0 1
  %285 = vperm.xlu0 %284, %v33
  %v286 = vpop.permute.xlu0 %285
  %288 = vset.pattern.permute.xlu0 1
  %289 = vperm.xlu0 %288, %v34
  %v290 = vpop.permute.xlu0 %289
  %292 = vset.pattern.permute.xlu0 1
  %293 = vperm.xlu0 %292, %v35
  %v294 = vpop.permute.xlu0 %293
  %296 = vset.pattern.permute.xlu0 1
  %297 = vperm.xlu0 %296, %v36
  %v298 = vpop.permute.xlu0 %297
  %300 = vset.pattern.permute.xlu0 1
  %301 = vperm.xlu0 %300, %v37
  %v302 = vpop.permute.xlu0 %301
  %304 = vset.pattern.permute.xlu0 1
  %305 = vperm.xlu0 %304, %v38
  %v306 = vpop.permute.xlu0 %305
  %308 = vset.pattern.permute.xlu0 1
  %309 = vperm.xlu0 %308, %v39
  %v310 = vpop.permute.xlu0 %309
  %312 = vset.pattern.permute.xlu0 1
  %313 = vperm.xlu0 %312, %v40
  %v314 = vpop.permute.xlu0 %313
  %316 = vset.pattern.permute.xlu0 1
  %317 = vperm.xlu0 %316, %v41
  %v318 = vpop.permute.xlu0 %317
  %320 = vset.pattern.permute.xlu0 1
  %321 = vperm.xlu0 %320, %v42
  %v322 = vpop.permute.xlu0 %321
  %324 = vset.pattern.permute.xlu0 1
  %325 = vperm.xlu0 %324, %v43
  %v326 = vpop.permute.xlu0 %325
  %328 = vset.pattern.permute.xlu0 1
  %329 = vperm.xlu0 %328, %v44
  %v330 = vpop.permute.xlu0 %329
  %332 = vset.pattern.permute.xlu0 1
  %333 = vperm.xlu0 %332, %v45
  %v334 = vpop.permute.xlu0 %333
  %336 = vset.pattern.permute.xlu0 1
  %337 = vperm.xlu0 %336, %v46
  %v338 = vpop.permute.xlu0 %337
  %340 = vset.pattern.permute.xlu0 1
  %341 = vperm.xlu0 %340, %v47
  %v342 = vpop.permute.xlu0 %341
  %344 = vset.pattern.permute.xlu0 1
  %345 = vperm.xlu0 %344, %v48
  %v346 = vpop.permute.xlu0 %345
  %348 = vset.pattern.permute.xlu0 1
  %349 = vperm.xlu0 %348, %v49
  %v350 = vpop.permute.xlu0 %349
  %352 = vset.pattern.permute.xlu0 1
  %353 = vperm.xlu0 %352, %v50
  %v354 = vpop.permute.xlu0 %353
  %356 = vset.pattern.permute.xlu0 1
  %357 = vperm.xlu0 %356, %v51
  %v358 = vpop.permute.xlu0 %357
  %360 = vset.pattern.permute.xlu0 1
  %361 = vperm.xlu0 %360, %v52
  %v362 = vpop.permute.xlu0 %361
  %364 = vset.pattern.permute.xlu0 1
  %365 = vperm.xlu0 %364, %v53
  %v366 = vpop.permute.xlu0 %365
  %368 = vset.pattern.permute.xlu0 1
  %369 = vperm.xlu0 %368, %v54
  %v370 = vpop.permute.xlu0 %369
  %372 = vset.pattern.permute.xlu0 1
  %373 = vperm.xlu0 %372, %v55
  %v374 = vpop.permute.xlu0 %373
  %376 = vset.pattern.permute.xlu0 1
  %377 = vperm.xlu0 %376, %v56
  %v378 = vpop.permute.xlu0 %377
  %v380 = vadd.f32 %v220, %v254
  %v381 = vadd.f32 %v221, %v258
  %v382 = vadd.f32 %v222, %v262
  %v383 = vadd.f32 %v223, %v266
  %v384 = vadd.f32 %v224, %v270
  %v385 = vadd.f32 %v225, %v274
  %v386 = vadd.f32 %v226, %v278
  %v387 = vadd.f32 %v227, %v282
  %v388 = vadd.f32 %v228, %v286
  %v389 = vadd.f32 %v229, %v290
  %v390 = vadd.f32 %v230, %v294
  %v391 = vadd.f32 %v231, %v298
  %v392 = vadd.f32 %v232, %v302
  %v393 = vadd.f32 %v233, %v306
  %v394 = vadd.f32 %v234, %v310
  %v395 = vadd.f32 %v235, %v314
  %v396 = vadd.f32 %v236, %v318
  %v397 = vadd.f32 %v237, %v322
  %v398 = vadd.f32 %v238, %v326
  %v399 = vadd.f32 %v239, %v330
  %v400 = vadd.f32 %v240, %v334
  %v401 = vadd.f32 %v241, %v338
  %v402 = vadd.f32 %v242, %v342
  %v403 = vadd.f32 %v243, %v346
  %v404 = vadd.f32 %v244, %v350
  %v405 = vadd.f32 %v245, %v354
  %v406 = vadd.f32 %v246, %v358
  %v407 = vadd.f32 %v247, %v362
  %v408 = vadd.f32 %v248, %v366
  %v409 = vadd.f32 %v249, %v370
  %v410 = vadd.f32 %v250, %v374
  %v411 = vadd.f32 %v251, %v378
  %v412 = vmax.f32 %v380, 0.0
  %v413 = vmax.f32 %v381, 0.0
  %v414 = vmax.f32 %v382, 0.0
  %v415 = vmax.f32 %v383, 0.0
  %v416 = vmax.f32 %v384, 0.0
  %v417 = vmax.f32 %v385, 0.0
  %v418 = vmax.f32 %v386, 0.0
  %v419 = vmax.f32 %v387, 0.0
  %v420 = vmax.f32 %v388, 0.0
  %v421 = vmax.f32 %v389, 0.0
  %v422 = vmax.f32 %v390, 0.0
  %v423 = vmax.f32 %v391, 0.0
  %v424 = vmax.f32 %v392, 0.0
  %v425 = vmax.f32 %v393, 0.0
  %v426 = vmax.f32 %v394, 0.0
  %v427 = vmax.f32 %v395, 0.0
  %v428 = vmax.f32 %v396, 0.0
  %v429 = vmax.f32 %v397, 0.0
  %v430 = vmax.f32 %v398, 0.0
  %v431 = vmax.f32 %v399, 0.0
  %v432 = vmax.f32 %v400, 0.0
  %v433 = vmax.f32 %v401, 0.0
  %v434 = vmax.f32 %v402, 0.0
  %v435 = vmax.f32 %v403, 0.0
  %v436 = vmax.f32 %v404, 0.0
  %v437 = vmax.f32 %v405, 0.0
  %v438 = vmax.f32 %v406, 0.0
  %v439 = vmax.f32 %v407, 0.0
  %v440 = vmax.f32 %v408, 0.0
  %v441 = vmax.f32 %v409, 0.0
  %v442 = vmax.f32 %v410, 0.0
  %v443 = vmax.f32 %v411, 0.0
  %v444 = vpack.c.bf16 %v413, %v412
  %v445 = vpack.c.bf16 %v415, %v414
  %v446 = vpack.c.bf16 %v417, %v416
  %v447 = vpack.c.bf16 %v419, %v418
  %v448 = vpack.c.bf16 %v421, %v420
  %v449 = vpack.c.bf16 %v423, %v422
  %v450 = vpack.c.bf16 %v425, %v424
  %v451 = vpack.c.bf16 %v427, %v426
  %v452 = vpack.c.bf16 %v429, %v428
  %v453 = vpack.c.bf16 %v431, %v430
  %v454 = vpack.c.bf16 %v433, %v432
  %v455 = vpack.c.bf16 %v435, %v434
  %v456 = vpack.c.bf16 %v437, %v436
  %v457 = vpack.c.bf16 %v439, %v438
  %v458 = vpack.c.bf16 %v441, %v440
  %v459 = vpack.c.bf16 %v443, %v442
  %v460 = vld [vmem:[%s2] sm:$0xff]
  %v461 = vld [vmem:[%s2 + $0x8] sm:$0xff]
  %v462 = vld [vmem:[%s2 + $0x10] sm:$0xff]
  %v463 = vld [vmem:[%s2 + $0x18] sm:$0xff]
  %v464 = vld [vmem:[%s2 + $0x20] sm:$0xff]
  %v465 = vld [vmem:[%s2 + $0x28] sm:$0xff]
  %v466 = vld [vmem:[%s2 + $0x30] sm:$0xff]
  %v467 = vld [vmem:[%s2 + $0x38] sm:$0xff]
  %v468 = vld [vmem:[%s2 + $0x40] sm:$0xff]
  %v469 = vld [vmem:[%s2 + $0x48] sm:$0xff]
  %v470 = vld [vmem:[%s2 + $0x50] sm:$0xff]
  %v471 = vld [vmem:[%s2 + $0x58] sm:$0xff]
  %v472 = vld [vmem:[%s2 + $0x60] sm:$0xff]
  %v473 = vld [vmem:[%s2 + $0x68] sm:$0xff]
  %v474 = vld [vmem:[%s2 + $0x70] sm:$0xff]
  %v475 = vld [vmem:[%s2 + $0x78] sm:$0xff]
  %v476 = vld [vmem:[%s2 + $0x80] sm:$0xff]
  %v477 = vld [vmem:[%s2 + $0x88] sm:$0xff]
  %v478 = vld [vmem:[%s2 + $0x90] sm:$0xff]
  %v479 = vld [vmem:[%s2 + $0x98] sm:$0xff]
  %v480 = vld [vmem:[%s2 + $0xa0] sm:$0xff]
  %v481 = vld [vmem:[%s2 + $0xa8] sm:$0xff]
  %v482 = vld [vmem:[%s2 + $0xb0] sm:$0xff]
  %v483 = vld [vmem:[%s2 + $0xb8] sm:$0xff]
  %v484 = vld [vmem:[%s2 + $0xc0] sm:$0xff]
  %v485 = vld [vmem:[%s2 + $0xc8] sm:$0xff]
  %v486 = vld [vmem:[%s2 + $0xd0] sm:$0xff]
  %v487 = vld [vmem:[%s2 + $0xd8] sm:$0xff]
  %v488 = vld [vmem:[%s2 + $0xe0] sm:$0xff]
  %v489 = vld [vmem:[%s2 + $0xe8] sm:$0xff]
  %v490 = vld [vmem:[%s2 + $0xf0] sm:$0xff]
  %v491 = vld [vmem:[%s2 + $0xf8] sm:$0xff]
  %492 = vset.pattern.permute.xlu0 2
  %493 = vperm.xlu0 %492, %v25
  %v494 = vpop.permute.xlu0 %493
  %496 = vset.pattern.permute.xlu0 2
  %497 = vperm.xlu0 %496, %v26
  %v498 = vpop.permute.xlu0 %497
  %500 = vset.pattern.permute.xlu0 2
  %501 = vperm.xlu0 %500, %v27
  %v502 = vpop.permute.xlu0 %501
  %504 = vset.pattern.permute.xlu0 2
  %505 = vperm.xlu0 %504, %v28
  %v506 = vpop.permute.xlu0 %505
  %508 = vset.pattern.permute.xlu0 2
  %509 = vperm.xlu0 %508, %v29
  %v510 = vpop.permute.xlu0 %509
  %512 = vset.pattern.permute.xlu0 2
  %513 = vperm.xlu0 %512, %v30
  %v514 = vpop.permute.xlu0 %513
  %516 = vset.pattern.permute.xlu0 2
  %517 = vperm.xlu0 %516, %v31
  %v518 = vpop.permute.xlu0 %517
  %520 = vset.pattern.permute.xlu0 2
  %521 = vperm.xlu0 %520, %v32
  %v522 = vpop.permute.xlu0 %521
  %524 = vset.pattern.permute.xlu0 2
  %525 = vperm.xlu0 %524, %v33
  %v526 = vpop.permute.xlu0 %525
  %528 = vset.pattern.permute.xlu0 2
  %529 = vperm.xlu0 %528, %v34
  %v530 = vpop.permute.xlu0 %529
  %532 = vset.pattern.permute.xlu0 2
  %533 = vperm.xlu0 %532, %v35
  %v534 = vpop.permute.xlu0 %533
  %536 = vset.pattern.permute.xlu0 2
  %537 = vperm.xlu0 %536, %v36
  %v538 = vpop.permute.xlu0 %537
  %540 = vset.pattern.permute.xlu0 2
  %541 = vperm.xlu0 %540, %v37
  %v542 = vpop.permute.xlu0 %541
  %544 = vset.pattern.permute.xlu0 2
  %545 = vperm.xlu0 %544, %v38
  %v546 = vpop.permute.xlu0 %545
  %548 = vset.pattern.permute.xlu0 2
  %549 = vperm.xlu0 %548, %v39
  %v550 = vpop.permute.xlu0 %549
  %552 = vset.pattern.permute.xlu0 2
  %553 = vperm.xlu0 %552, %v40
  %v554 = vpop.permute.xlu0 %553
  %556 = vset.pattern.permute.xlu0 2
  %557 = vperm.xlu0 %556, %v41
  %v558 = vpop.permute.xlu0 %557
  %560 = vset.pattern.permute.xlu0 2
  %561 = vperm.xlu0 %560, %v42
  %v562 = vpop.permute.xlu0 %561
  %564 = vset.pattern.permute.xlu0 2
  %565 = vperm.xlu0 %564, %v43
  %v566 = vpop.permute.xlu0 %565
  %568 = vset.pattern.permute.xlu0 2
  %569 = vperm.xlu0 %568, %v44
  %v570 = vpop.permute.xlu0 %569
  %572 = vset.pattern.permute.xlu0 2
  %573 = vperm.xlu0 %572, %v45
  %v574 = vpop.permute.xlu0 %573
  %576 = vset.pattern.permute.xlu0 2
  %577 = vperm.xlu0 %576, %v46
  %v578 = vpop.permute.xlu0 %577
  %580 = vset.pattern.permute.xlu0 2
  %581 = vperm.xlu0 %580, %v47
  %v582 = vpop.permute.xlu0 %581
  %584 = vset.pattern.permute.xlu0 2
  %585 = vperm.xlu0 %584, %v48
  %v586 = vpop.permute.xlu0 %585
  %588 = vset.pattern.permute.xlu0 2
  %589 = vperm.xlu0 %588, %v49
  %v590 = vpop.permute.xlu0 %589
  %592 = vset.pattern.permute.xlu0 2
  %593 = vperm.xlu0 %592, %v50
  %v594 = vpop.permute.xlu0 %593
  %596 = vset.pattern.permute.xlu0 2
  %597 = vperm.xlu0 %596, %v51
  %v598 = vpop.permute.xlu0 %597
  %600 = vset.pattern.permute.xlu0 2
  %601 = vperm.xlu0 %600, %v52
  %v602 = vpop.permute.xlu0 %601
  %604 = vset.pattern.permute.xlu0 2
  %605 = vperm.xlu0 %604, %v53
  %v606 = vpop.permute.xlu0 %605
  %608 = vset.pattern.permute.xlu0 2
  %609 = vperm.xlu0 %608, %v54
  %v610 = vpop.permute.xlu0 %609
  %612 = vset.pattern.permute.xlu0 2
  %613 = vperm.xlu0 %612, %v55
  %v614 = vpop.permute.xlu0 %613
  %616 = vset.pattern.permute.xlu0 2
  %617 = vperm.xlu0 %616, %v56
  %v618 = vpop.permute.xlu0 %617
  %v652 = vunpack.c.l.b16 %v460
  %v653 = vunpack.c.h.b16 %v460
  %v654 = vunpack.c.l.b16 %v461
  %v655 = vunpack.c.h.b16 %v461
  %v656 = vunpack.c.l.b16 %v462
  %v657 = vunpack.c.h.b16 %v462
  %v658 = vunpack.c.l.b16 %v463
  %v659 = vunpack.c.h.b16 %v463
  %v660 = vunpack.c.l.b16 %v464
  %v661 = vunpack.c.h.b16 %v464
  %v662 = vunpack.c.l.b16 %v465
  %v663 = vunpack.c.h.b16 %v465
  %v664 = vunpack.c.l.b16 %v466
  %v665 = vunpack.c.h.b16 %v466
  %v666 = vunpack.c.l.b16 %v467
  %v667 = vunpack.c.h.b16 %v467
  %v668 = vunpack.c.l.b16 %v468
  %v669 = vunpack.c.h.b16 %v468
  %v670 = vunpack.c.l.b16 %v469
  %v671 = vunpack.c.h.b16 %v469
  %v672 = vunpack.c.l.b16 %v470
  %v673 = vunpack.c.h.b16 %v470
  %v674 = vunpack.c.l.b16 %v471
  %v675 = vunpack.c.h.b16 %v471
  %v676 = vunpack.c.l.b16 %v472
  %v677 = vunpack.c.h.b16 %v472
  %v678 = vunpack.c.l.b16 %v473
  %v679 = vunpack.c.h.b16 %v473
  %v680 = vunpack.c.l.b16 %v474
  %v681 = vunpack.c.h.b16 %v474
  %v682 = vunpack.c.l.b16 %v475
  %v683 = vunpack.c.h.b16 %v475
  %v684 = vunpack.c.l.b16 %v476
  %v685 = vunpack.c.h.b16 %v476
  %v686 = vunpack.c.l.b16 %v477
  %v687 = vunpack.c.h.b16 %v477
  %v688 = vunpack.c.l.b16 %v478
  %v689 = vunpack.c.h.b16 %v478
  %v690 = vunpack.c.l.b16 %v479
  %v691 = vunpack.c.h.b16 %v479
  %v692 = vunpack.c.l.b16 %v480
  %v693 = vunpack.c.h.b16 %v480
  %v694 = vunpack.c.l.b16 %v481
  %v695 = vunpack.c.h.b16 %v481
  %v696 = vunpack.c.l.b16 %v482
  %v697 = vunpack.c.h.b16 %v482
  %v698 = vunpack.c.l.b16 %v483
  %v699 = vunpack.c.h.b16 %v483
  %v700 = vunpack.c.l.b16 %v484
  %v701 = vunpack.c.h.b16 %v484
  %v702 = vunpack.c.l.b16 %v485
  %v703 = vunpack.c.h.b16 %v485
  %v704 = vunpack.c.l.b16 %v486
  %v705 = vunpack.c.h.b16 %v486
  %v706 = vunpack.c.l.b16 %v487
  %v707 = vunpack.c.h.b16 %v487
  %v708 = vunpack.c.l.b16 %v488
  %v709 = vunpack.c.h.b16 %v488
  %v710 = vunpack.c.l.b16 %v489
  %v711 = vunpack.c.h.b16 %v489
  %v712 = vunpack.c.l.b16 %v490
  %v713 = vunpack.c.h.b16 %v490
  %v714 = vunpack.c.l.b16 %v491
  %v715 = vunpack.c.h.b16 %v491
  %v716 = vpack.c.b16 %v654, %v652
  %v717 = vpack.c.b16 %v655, %v653
  %v718 = vpack.c.b16 %v658, %v656
  %v719 = vpack.c.b16 %v659, %v657
  %v720 = vpack.c.b16 %v662, %v660
  %v721 = vpack.c.b16 %v663, %v661
  %v722 = vpack.c.b16 %v666, %v664
  %v723 = vpack.c.b16 %v667, %v665
  %v724 = vpack.c.b16 %v670, %v668
  %v725 = vpack.c.b16 %v671, %v669
  %v726 = vpack.c.b16 %v674, %v672
  %v727 = vpack.c.b16 %v675, %v673
  %v728 = vpack.c.b16 %v678, %v676
  %v729 = vpack.c.b16 %v679, %v677
  %v730 = vpack.c.b16 %v682, %v680
  %v731 = vpack.c.b16 %v683, %v681
  %v732 = vpack.c.b16 %v686, %v684
  %v733 = vpack.c.b16 %v687, %v685
  %v734 = vpack.c.b16 %v690, %v688
  %v735 = vpack.c.b16 %v691, %v689
  %v736 = vpack.c.b16 %v694, %v692
  %v737 = vpack.c.b16 %v695, %v693
  %v738 = vpack.c.b16 %v698, %v696
  %v739 = vpack.c.b16 %v699, %v697
  %v740 = vpack.c.b16 %v702, %v700
  %v741 = vpack.c.b16 %v703, %v701
  %v742 = vpack.c.b16 %v706, %v704
  %v743 = vpack.c.b16 %v707, %v705
  %v744 = vpack.c.b16 %v710, %v708
  %v745 = vpack.c.b16 %v711, %v709
  %v746 = vpack.c.b16 %v714, %v712
  %v747 = vpack.c.b16 %v715, %v713
  %780 = vmatpush.bf16.msra.mxu0 %v451
  %781 = vmatpush.bf16.msra.mxu0 %v450
  %782 = vmatpush.bf16.msra.mxu0 %v449
  %783 = vmatpush.bf16.msra.mxu0 %v448
  %784 = vmatpush.bf16.msra.mxu0 %v447
  %785 = vmatpush.bf16.msra.mxu0 %v446
  %786 = vmatpush.bf16.msra.mxu0 %v445
  %787 = vmatpush.bf16.msra.mxu0 %v444
  %788 = vmatmul.bf16.gmra.mxu0 %v716
  %v789 = vpop.f32.mrf.mxu0
  %v790 = vadd.f32 %v494, %v789
  %v791 = vpop.f32.mrf.mxu0
  %v792 = vadd.f32 %v498, %v791
  %793 = vmatmul.bf16.gmra.mxu0 %v718
  %v794 = vpop.f32.mrf.mxu0
  %v795 = vadd.f32 %v502, %v794
  %v796 = vpop.f32.mrf.mxu0
  %v797 = vadd.f32 %v506, %v796
  %798 = vmatmul.bf16.gmra.mxu0 %v720
  %v799 = vpop.f32.mrf.mxu0
  %v800 = vadd.f32 %v510, %v799
  %v801 = vpop.f32.mrf.mxu0
  %v802 = vadd.f32 %v514, %v801
  %803 = vmatmul.bf16.gmra.mxu0 %v722
  %v804 = vpop.f32.mrf.mxu0
  %v805 = vadd.f32 %v518, %v804
  %v806 = vpop.f32.mrf.mxu0
  %v807 = vadd.f32 %v522, %v806
  %808 = vmatmul.bf16.gmra.mxu0 %v724
  %v809 = vpop.f32.mrf.mxu0
  %v810 = vadd.f32 %v526, %v809
  %v811 = vpop.f32.mrf.mxu0
  %v812 = vadd.f32 %v530, %v811
  %813 = vmatmul.bf16.gmra.mxu0 %v726
  %v814 = vpop.f32.mrf.mxu0
  %v815 = vadd.f32 %v534, %v814
  %v816 = vpop.f32.mrf.mxu0
  %v817 = vadd.f32 %v538, %v816
  %818 = vmatmul.bf16.gmra.mxu0 %v728
  %v819 = vpop.f32.mrf.mxu0
  %v820 = vadd.f32 %v542, %v819
  %v821 = vpop.f32.mrf.mxu0
  %v822 = vadd.f32 %v546, %v821
  %823 = vmatmul.bf16.gmra.mxu0 %v730
  %v824 = vpop.f32.mrf.mxu0
  %v825 = vadd.f32 %v550, %v824
  %v826 = vpop.f32.mrf.mxu0
  %v827 = vadd.f32 %v554, %v826
  %828 = vmatmul.bf16.gmra.mxu0 %v732
  %v829 = vpop.f32.mrf.mxu0
  %v830 = vadd.f32 %v558, %v829
  %v831 = vpop.f32.mrf.mxu0
  %v832 = vadd.f32 %v562, %v831
  %833 = vmatmul.bf16.gmra.mxu0 %v734
  %v834 = vpop.f32.mrf.mxu0
  %v835 = vadd.f32 %v566, %v834
  %v836 = vpop.f32.mrf.mxu0
  %v837 = vadd.f32 %v570, %v836
  %838 = vmatmul.bf16.gmra.mxu0 %v736
  %v839 = vpop.f32.mrf.mxu0
  %v840 = vadd.f32 %v574, %v839
  %v841 = vpop.f32.mrf.mxu0
  %v842 = vadd.f32 %v578, %v841
  %843 = vmatmul.bf16.gmra.mxu0 %v738
  %v844 = vpop.f32.mrf.mxu0
  %v845 = vadd.f32 %v582, %v844
  %v846 = vpop.f32.mrf.mxu0
  %v847 = vadd.f32 %v586, %v846
  %848 = vmatmul.bf16.gmra.mxu0 %v740
  %v849 = vpop.f32.mrf.mxu0
  %v850 = vadd.f32 %v590, %v849
  %v851 = vpop.f32.mrf.mxu0
  %v852 = vadd.f32 %v594, %v851
  %853 = vmatmul.bf16.gmra.mxu0 %v742
  %v854 = vpop.f32.mrf.mxu0
  %v855 = vadd.f32 %v598, %v854
  %v856 = vpop.f32.mrf.mxu0
  %v857 = vadd.f32 %v602, %v856
  %858 = vmatmul.bf16.gmra.mxu0 %v744
  %v859 = vpop.f32.mrf.mxu0
  %v860 = vadd.f32 %v606, %v859
  %v861 = vpop.f32.mrf.mxu0
  %v862 = vadd.f32 %v610, %v861
  %863 = vmatmul.bf16.gmra.mxu0 %v746
  %v864 = vpop.f32.mrf.mxu0
  %v865 = vadd.f32 %v614, %v864
  %v866 = vpop.f32.mrf.mxu0
  %v867 = vadd.f32 %v618, %v866
  %868 = vdwg.mxu0
  %869 = vmatpush.bf16.msra.mxu0 %v459
  %870 = vmatpush.bf16.msra.mxu0 %v458
  %871 = vmatpush.bf16.msra.mxu0 %v457
  %872 = vmatpush.bf16.msra.mxu0 %v456
  %873 = vmatpush.bf16.msra.mxu0 %v455
  %874 = vmatpush.bf16.msra.mxu0 %v454
  %875 = vmatpush.bf16.msra.mxu0 %v453
  %876 = vmatpush.bf16.msra.mxu0 %v452
  %877 = vmatmul.bf16.gmra.mxu0 %v717
  %v878 = vpop.f32.mrf.mxu0
  %v879 = vadd.f32 %v790, %v878
  %v880 = vpop.f32.mrf.mxu0
  %v881 = vadd.f32 %v792, %v880
  %882 = vmatmul.bf16.gmra.mxu0 %v719
  %v883 = vpop.f32.mrf.mxu0
  %v884 = vadd.f32 %v795, %v883
  %v885 = vpop.f32.mrf.mxu0
  %v886 = vadd.f32 %v797, %v885
  %887 = vmatmul.bf16.gmra.mxu0 %v721
  %v888 = vpop.f32.mrf.mxu0
  %v889 = vadd.f32 %v800, %v888
  %v890 = vpop.f32.mrf.mxu0
  %v891 = vadd.f32 %v802, %v890
  %892 = vmatmul.bf16.gmra.mxu0 %v723
  %v893 = vpop.f32.mrf.mxu0
  %v894 = vadd.f32 %v805, %v893
  %v895 = vpop.f32.mrf.mxu0
  %v896 = vadd.f32 %v807, %v895
  %897 = vmatmul.bf16.gmra.mxu0 %v725
  %v898 = vpop.f32.mrf.mxu0
  %v899 = vadd.f32 %v810, %v898
  %v900 = vpop.f32.mrf.mxu0
  %v901 = vadd.f32 %v812, %v900
  %902 = vmatmul.bf16.gmra.mxu0 %v727
  %v903 = vpop.f32.mrf.mxu0
  %v904 = vadd.f32 %v815, %v903
  %v905 = vpop.f32.mrf.mxu0
  %v906 = vadd.f32 %v817, %v905
  %907 = vmatmul.bf16.gmra.mxu0 %v729
  %v908 = vpop.f32.mrf.mxu0
  %v909 = vadd.f32 %v820, %v908
  %v910 = vpop.f32.mrf.mxu0
  %v911 = vadd.f32 %v822, %v910
  %912 = vmatmul.bf16.gmra.mxu0 %v731
  %v913 = vpop.f32.mrf.mxu0
  %v914 = vadd.f32 %v825, %v913
  %v915 = vpop.f32.mrf.mxu0
  %v916 = vadd.f32 %v827, %v915
  %917 = vmatmul.bf16.gmra.mxu0 %v733
  %v918 = vpop.f32.mrf.mxu0
  %v919 = vadd.f32 %v830, %v918
  %v920 = vpop.f32.mrf.mxu0
  %v921 = vadd.f32 %v832, %v920
  %922 = vmatmul.bf16.gmra.mxu0 %v735
  %v923 = vpop.f32.mrf.mxu0
  %v924 = vadd.f32 %v835, %v923
  %v925 = vpop.f32.mrf.mxu0
  %v926 = vadd.f32 %v837, %v925
  %927 = vmatmul.bf16.gmra.mxu0 %v737
  %v928 = vpop.f32.mrf.mxu0
  %v929 = vadd.f32 %v840, %v928
  %v930 = vpop.f32.mrf.mxu0
  %v931 = vadd.f32 %v842, %v930
  %932 = vmatmul.bf16.gmra.mxu0 %v739
  %v933 = vpop.f32.mrf.mxu0
  %v934 = vadd.f32 %v845, %v933
  %v935 = vpop.f32.mrf.mxu0
  %v936 = vadd.f32 %v847, %v935
  %937 = vmatmul.bf16.gmra.mxu0 %v741
  %v938 = vpop.f32.mrf.mxu0
  %v939 = vadd.f32 %v850, %v938
  %v940 = vpop.f32.mrf.mxu0
  %v941 = vadd.f32 %v852, %v940
  %942 = vmatmul.bf16.gmra.mxu0 %v743
  %v943 = vpop.f32.mrf.mxu0
  %v944 = vadd.f32 %v855, %v943
  %v945 = vpop.f32.mrf.mxu0
  %v946 = vadd.f32 %v857, %v945
  %947 = vmatmul.bf16.gmra.mxu0 %v745
  %v948 = vpop.f32.mrf.mxu0
  %v949 = vadd.f32 %v860, %v948
  %v950 = vpop.f32.mrf.mxu0
  %v951 = vadd.f32 %v862, %v950
  %952 = vmatmul.bf16.gmra.mxu0 %v747
  %v953 = vpop.f32.mrf.mxu0
  %v954 = vadd.f32 %v865, %v953
  %v955 = vpop.f32.mrf.mxu0
  %v956 = vadd.f32 %v867, %v955
  %957 = vdwg.mxu0
  %v958 = vmax.f32 %v879, 0.0
  %v959 = vmax.f32 %v881, 0.0
  %v960 = vmax.f32 %v884, 0.0
  %v961 = vmax.f32 %v886, 0.0
  %v962 = vmax.f32 %v889, 0.0
  %v963 = vmax.f32 %v891, 0.0
  %v964 = vmax.f32 %v894, 0.0
  %v965 = vmax.f32 %v896, 0.0
  %v966 = vmax.f32 %v899, 0.0
  %v967 = vmax.f32 %v901, 0.0
  %v968 = vmax.f32 %v904, 0.0
  %v969 = vmax.f32 %v906, 0.0
  %v970 = vmax.f32 %v909, 0.0
  %v971 = vmax.f32 %v911, 0.0
  %v972 = vmax.f32 %v914, 0.0
  %v973 = vmax.f32 %v916, 0.0
  %v974 = vmax.f32 %v919, 0.0
  %v975 = vmax.f32 %v921, 0.0
  %v976 = vmax.f32 %v924, 0.0
  %v977 = vmax.f32 %v926, 0.0
  %v978 = vmax.f32 %v929, 0.0
  %v979 = vmax.f32 %v931, 0.0
  %v980 = vmax.f32 %v934, 0.0
  %v981 = vmax.f32 %v936, 0.0
  %v982 = vmax.f32 %v939, 0.0
  %v983 = vmax.f32 %v941, 0.0
  %v984 = vmax.f32 %v944, 0.0
  %v985 = vmax.f32 %v946, 0.0
  %v986 = vmax.f32 %v949, 0.0
  %v987 = vmax.f32 %v951, 0.0
  %v988 = vmax.f32 %v954, 0.0
  %v989 = vmax.f32 %v956, 0.0
  %v990 = vpack.c.bf16 %v959, %v958
  %v991 = vpack.c.bf16 %v961, %v960
  %v992 = vpack.c.bf16 %v963, %v962
  %v993 = vpack.c.bf16 %v965, %v964
  %v994 = vpack.c.bf16 %v967, %v966
  %v995 = vpack.c.bf16 %v969, %v968
  %v996 = vpack.c.bf16 %v971, %v970
  %v997 = vpack.c.bf16 %v973, %v972
  %v998 = vpack.c.bf16 %v975, %v974
  %v999 = vpack.c.bf16 %v977, %v976
  %v1000 = vpack.c.bf16 %v979, %v978
  %v1001 = vpack.c.bf16 %v981, %v980
  %v1002 = vpack.c.bf16 %v983, %v982
  %v1003 = vpack.c.bf16 %v985, %v984
  %v1004 = vpack.c.bf16 %v987, %v986
  %v1005 = vpack.c.bf16 %v989, %v988
  %v1006 = vld [vmem:[%s3] sm:$0xff]
  %v1007 = vld [vmem:[%s3 + $0x8] sm:$0xff]
  %v1008 = vld [vmem:[%s3 + $0x10] sm:$0xff]
  %v1009 = vld [vmem:[%s3 + $0x18] sm:$0xff]
  %v1010 = vld [vmem:[%s3 + $0x20] sm:$0xff]
  %v1011 = vld [vmem:[%s3 + $0x28] sm:$0xff]
  %v1012 = vld [vmem:[%s3 + $0x30] sm:$0xff]
  %v1013 = vld [vmem:[%s3 + $0x38] sm:$0xff]
  %v1014 = vld [vmem:[%s3 + $0x40] sm:$0xff]
  %v1015 = vld [vmem:[%s3 + $0x48] sm:$0xff]
  %v1016 = vld [vmem:[%s3 + $0x50] sm:$0xff]
  %v1017 = vld [vmem:[%s3 + $0x58] sm:$0xff]
  %v1018 = vld [vmem:[%s3 + $0x60] sm:$0xff]
  %v1019 = vld [vmem:[%s3 + $0x68] sm:$0xff]
  %v1020 = vld [vmem:[%s3 + $0x70] sm:$0xff]
  %v1021 = vld [vmem:[%s3 + $0x78] sm:$0xff]
  %v1022 = vld [vmem:[%s3 + $0x80] sm:$0xff]
  %v1023 = vld [vmem:[%s3 + $0x88] sm:$0xff]
  %v1024 = vld [vmem:[%s3 + $0x90] sm:$0xff]
  %v1025 = vld [vmem:[%s3 + $0x98] sm:$0xff]
  %v1026 = vld [vmem:[%s3 + $0xa0] sm:$0xff]
  %v1027 = vld [vmem:[%s3 + $0xa8] sm:$0xff]
  %v1028 = vld [vmem:[%s3 + $0xb0] sm:$0xff]
  %v1029 = vld [vmem:[%s3 + $0xb8] sm:$0xff]
  %v1030 = vld [vmem:[%s3 + $0xc0] sm:$0xff]
  %v1031 = vld [vmem:[%s3 + $0xc8] sm:$0xff]
  %v1032 = vld [vmem:[%s3 + $0xd0] sm:$0xff]
  %v1033 = vld [vmem:[%s3 + $0xd8] sm:$0xff]
  %v1034 = vld [vmem:[%s3 + $0xe0] sm:$0xff]
  %v1035 = vld [vmem:[%s3 + $0xe8] sm:$0xff]
  %v1036 = vld [vmem:[%s3 + $0xf0] sm:$0xff]
  %v1037 = vld [vmem:[%s3 + $0xf8] sm:$0xff]
  %1038 = vset.pattern.permute.xlu0 3
  %1039 = vperm.xlu0 %1038, %v25
  %v1040 = vpop.permute.xlu0 %1039
  %1042 = vset.pattern.permute.xlu0 3
  %1043 = vperm.xlu0 %1042, %v26
  %v1044 = vpop.permute.xlu0 %1043
  %1046 = vset.pattern.permute.xlu0 3
  %1047 = vperm.xlu0 %1046, %v27
  %v1048 = vpop.permute.xlu0 %1047
  %1050 = vset.pattern.permute.xlu0 3
  %1051 = vperm.xlu0 %1050, %v28
  %v1052 = vpop.permute.xlu0 %1051
  %1054 = vset.pattern.permute.xlu0 3
  %1055 = vperm.xlu0 %1054, %v29
  %v1056 = vpop.permute.xlu0 %1055
  %1058 = vset.pattern.permute.xlu0 3
  %1059 = vperm.xlu0 %1058, %v30
  %v1060 = vpop.permute.xlu0 %1059
  %1062 = vset.pattern.permute.xlu0 3
  %1063 = vperm.xlu0 %1062, %v31
  %v1064 = vpop.permute.xlu0 %1063
  %1066 = vset.pattern.permute.xlu0 3
  %1067 = vperm.xlu0 %1066, %v32
  %v1068 = vpop.permute.xlu0 %1067
  %1070 = vset.pattern.permute.xlu0 3
  %1071 = vperm.xlu0 %1070, %v33
  %v1072 = vpop.permute.xlu0 %1071
  %1074 = vset.pattern.permute.xlu0 3
  %1075 = vperm.xlu0 %1074, %v34
  %v1076 = vpop.permute.xlu0 %1075
  %1078 = vset.pattern.permute.xlu0 3
  %1079 = vperm.xlu0 %1078, %v35
  %v1080 = vpop.permute.xlu0 %1079
  %1082 = vset.pattern.permute.xlu0 3
  %1083 = vperm.xlu0 %1082, %v36
  %v1084 = vpop.permute.xlu0 %1083
  %1086 = vset.pattern.permute.xlu0 3
  %1087 = vperm.xlu0 %1086, %v37
  %v1088 = vpop.permute.xlu0 %1087
  %1090 = vset.pattern.permute.xlu0 3
  %1091 = vperm.xlu0 %1090, %v38
  %v1092 = vpop.permute.xlu0 %1091
  %1094 = vset.pattern.permute.xlu0 3
  %1095 = vperm.xlu0 %1094, %v39
  %v1096 = vpop.permute.xlu0 %1095
  %1098 = vset.pattern.permute.xlu0 3
  %1099 = vperm.xlu0 %1098, %v40
  %v1100 = vpop.permute.xlu0 %1099
  %1102 = vset.pattern.permute.xlu0 3
  %1103 = vperm.xlu0 %1102, %v41
  %v1104 = vpop.permute.xlu0 %1103
  %1106 = vset.pattern.permute.xlu0 3
  %1107 = vperm.xlu0 %1106, %v42
  %v1108 = vpop.permute.xlu0 %1107
  %1110 = vset.pattern.permute.xlu0 3
  %1111 = vperm.xlu0 %1110, %v43
  %v1112 = vpop.permute.xlu0 %1111
  %1114 = vset.pattern.permute.xlu0 3
  %1115 = vperm.xlu0 %1114, %v44
  %v1116 = vpop.permute.xlu0 %1115
  %1118 = vset.pattern.permute.xlu0 3
  %1119 = vperm.xlu0 %1118, %v45
  %v1120 = vpop.permute.xlu0 %1119
  %1122 = vset.pattern.permute.xlu0 3
  %1123 = vperm.xlu0 %1122, %v46
  %v1124 = vpop.permute.xlu0 %1123
  %1126 = vset.pattern.permute.xlu0 3
  %1127 = vperm.xlu0 %1126, %v47
  %v1128 = vpop.permute.xlu0 %1127
  %1130 = vset.pattern.permute.xlu0 3
  %1131 = vperm.xlu0 %1130, %v48
  %v1132 = vpop.permute.xlu0 %1131
  %1134 = vset.pattern.permute.xlu0 3
  %1135 = vperm.xlu0 %1134, %v49
  %v1136 = vpop.permute.xlu0 %1135
  %1138 = vset.pattern.permute.xlu0 3
  %1139 = vperm.xlu0 %1138, %v50
  %v1140 = vpop.permute.xlu0 %1139
  %1142 = vset.pattern.permute.xlu0 3
  %1143 = vperm.xlu0 %1142, %v51
  %v1144 = vpop.permute.xlu0 %1143
  %1146 = vset.pattern.permute.xlu0 3
  %1147 = vperm.xlu0 %1146, %v52
  %v1148 = vpop.permute.xlu0 %1147
  %1150 = vset.pattern.permute.xlu0 3
  %1151 = vperm.xlu0 %1150, %v53
  %v1152 = vpop.permute.xlu0 %1151
  %1154 = vset.pattern.permute.xlu0 3
  %1155 = vperm.xlu0 %1154, %v54
  %v1156 = vpop.permute.xlu0 %1155
  %1158 = vset.pattern.permute.xlu0 3
  %1159 = vperm.xlu0 %1158, %v55
  %v1160 = vpop.permute.xlu0 %1159
  %1162 = vset.pattern.permute.xlu0 3
  %1163 = vperm.xlu0 %1162, %v56
  %v1164 = vpop.permute.xlu0 %1163
  %v1198 = vunpack.c.l.b16 %v1006
  %v1199 = vunpack.c.h.b16 %v1006
  %v1200 = vunpack.c.l.b16 %v1007
  %v1201 = vunpack.c.h.b16 %v1007
  %v1202 = vunpack.c.l.b16 %v1008
  %v1203 = vunpack.c.h.b16 %v1008
  %v1204 = vunpack.c.l.b16 %v1009
  %v1205 = vunpack.c.h.b16 %v1009
  %v1206 = vunpack.c.l.b16 %v1010
  %v1207 = vunpack.c.h.b16 %v1010
  %v1208 = vunpack.c.l.b16 %v1011
  %v1209 = vunpack.c.h.b16 %v1011
  %v1210 = vunpack.c.l.b16 %v1012
  %v1211 = vunpack.c.h.b16 %v1012
  %v1212 = vunpack.c.l.b16 %v1013
  %v1213 = vunpack.c.h.b16 %v1013
  %v1214 = vunpack.c.l.b16 %v1014
  %v1215 = vunpack.c.h.b16 %v1014
  %v1216 = vunpack.c.l.b16 %v1015
  %v1217 = vunpack.c.h.b16 %v1015
  %v1218 = vunpack.c.l.b16 %v1016
  %v1219 = vunpack.c.h.b16 %v1016
  %v1220 = vunpack.c.l.b16 %v1017
  %v1221 = vunpack.c.h.b16 %v1017
  %v1222 = vunpack.c.l.b16 %v1018
  %v1223 = vunpack.c.h.b16 %v1018
  %v1224 = vunpack.c.l.b16 %v1019
  %v1225 = vunpack.c.h.b16 %v1019
  %v1226 = vunpack.c.l.b16 %v1020
  %v1227 = vunpack.c.h.b16 %v1020
  %v1228 = vunpack.c.l.b16 %v1021
  %v1229 = vunpack.c.h.b16 %v1021
  %v1230 = vunpack.c.l.b16 %v1022
  %v1231 = vunpack.c.h.b16 %v1022
  %v1232 = vunpack.c.l.b16 %v1023
  %v1233 = vunpack.c.h.b16 %v1023
  %v1234 = vunpack.c.l.b16 %v1024
  %v1235 = vunpack.c.h.b16 %v1024
  %v1236 = vunpack.c.l.b16 %v1025
  %v1237 = vunpack.c.h.b16 %v1025
  %v1238 = vunpack.c.l.b16 %v1026
  %v1239 = vunpack.c.h.b16 %v1026
  %v1240 = vunpack.c.l.b16 %v1027
  %v1241 = vunpack.c.h.b16 %v1027
  %v1242 = vunpack.c.l.b16 %v1028
  %v1243 = vunpack.c.h.b16 %v1028
  %v1244 = vunpack.c.l.b16 %v1029
  %v1245 = vunpack.c.h.b16 %v1029
  %v1246 = vunpack.c.l.b16 %v1030
  %v1247 = vunpack.c.h.b16 %v1030
  %v1248 = vunpack.c.l.b16 %v1031
  %v1249 = vunpack.c.h.b16 %v1031
  %v1250 = vunpack.c.l.b16 %v1032
  %v1251 = vunpack.c.h.b16 %v1032
  %v1252 = vunpack.c.l.b16 %v1033
  %v1253 = vunpack.c.h.b16 %v1033
  %v1254 = vunpack.c.l.b16 %v1034
  %v1255 = vunpack.c.h.b16 %v1034
  %v1256 = vunpack.c.l.b16 %v1035
  %v1257 = vunpack.c.h.b16 %v1035
  %v1258 = vunpack.c.l.b16 %v1036
  %v1259 = vunpack.c.h.b16 %v1036
  %v1260 = vunpack.c.l.b16 %v1037
  %v1261 = vunpack.c.h.b16 %v1037
  %v1262 = vpack.c.b16 %v1200, %v1198
  %v1263 = vpack.c.b16 %v1201, %v1199
  %v1264 = vpack.c.b16 %v1204, %v1202
  %v1265 = vpack.c.b16 %v1205, %v1203
  %v1266 = vpack.c.b16 %v1208, %v1206
  %v1267 = vpack.c.b16 %v1209, %v1207
  %v1268 = vpack.c.b16 %v1212, %v1210
  %v1269 = vpack.c.b16 %v1213, %v1211
  %v1270 = vpack.c.b16 %v1216, %v1214
  %v1271 = vpack.c.b16 %v1217, %v1215
  %v1272 = vpack.c.b16 %v1220, %v1218
  %v1273 = vpack.c.b16 %v1221, %v1219
  %v1274 = vpack.c.b16 %v1224, %v1222
  %v1275 = vpack.c.b16 %v1225, %v1223
  %v1276 = vpack.c.b16 %v1228, %v1226
  %v1277 = vpack.c.b16 %v1229, %v1227
  %v1278 = vpack.c.b16 %v1232, %v1230
  %v1279 = vpack.c.b16 %v1233, %v1231
  %v1280 = vpack.c.b16 %v1236, %v1234
  %v1281 = vpack.c.b16 %v1237, %v1235
  %v1282 = vpack.c.b16 %v1240, %v1238
  %v1283 = vpack.c.b16 %v1241, %v1239
  %v1284 = vpack.c.b16 %v1244, %v1242
  %v1285 = vpack.c.b16 %v1245, %v1243
  %v1286 = vpack.c.b16 %v1248, %v1246
  %v1287 = vpack.c.b16 %v1249, %v1247
  %v1288 = vpack.c.b16 %v1252, %v1250
  %v1289 = vpack.c.b16 %v1253, %v1251
  %v1290 = vpack.c.b16 %v1256, %v1254
  %v1291 = vpack.c.b16 %v1257, %v1255
  %v1292 = vpack.c.b16 %v1260, %v1258
  %v1293 = vpack.c.b16 %v1261, %v1259
  %1326 = vmatpush.bf16.msra.mxu0 %v997
  %1327 = vmatpush.bf16.msra.mxu0 %v996
  %1328 = vmatpush.bf16.msra.mxu0 %v995
  %1329 = vmatpush.bf16.msra.mxu0 %v994
  %1330 = vmatpush.bf16.msra.mxu0 %v993
  %1331 = vmatpush.bf16.msra.mxu0 %v992
  %1332 = vmatpush.bf16.msra.mxu0 %v991
  %1333 = vmatpush.bf16.msra.mxu0 %v990
  %1334 = vmatmul.bf16.gmra.mxu0 %v1262
  %v1335 = vpop.f32.mrf.mxu0
  %v1336 = vadd.f32 %v1040, %v1335
  %v1337 = vpop.f32.mrf.mxu0
  %v1338 = vadd.f32 %v1044, %v1337
  %1339 = vmatmul.bf16.gmra.mxu0 %v1264
  %v1340 = vpop.f32.mrf.mxu0
  %v1341 = vadd.f32 %v1048, %v1340
  %v1342 = vpop.f32.mrf.mxu0
  %v1343 = vadd.f32 %v1052, %v1342
  %1344 = vmatmul.bf16.gmra.mxu0 %v1266
  %v1345 = vpop.f32.mrf.mxu0
  %v1346 = vadd.f32 %v1056, %v1345
  %v1347 = vpop.f32.mrf.mxu0
  %v1348 = vadd.f32 %v1060, %v1347
  %1349 = vmatmul.bf16.gmra.mxu0 %v1268
  %v1350 = vpop.f32.mrf.mxu0
  %v1351 = vadd.f32 %v1064, %v1350
  %v1352 = vpop.f32.mrf.mxu0
  %v1353 = vadd.f32 %v1068, %v1352
  %1354 = vmatmul.bf16.gmra.mxu0 %v1270
  %v1355 = vpop.f32.mrf.mxu0
  %v1356 = vadd.f32 %v1072, %v1355
  %v1357 = vpop.f32.mrf.mxu0
  %v1358 = vadd.f32 %v1076, %v1357
  %1359 = vmatmul.bf16.gmra.mxu0 %v1272
  %v1360 = vpop.f32.mrf.mxu0
  %v1361 = vadd.f32 %v1080, %v1360
  %v1362 = vpop.f32.mrf.mxu0
  %v1363 = vadd.f32 %v1084, %v1362
  %1364 = vmatmul.bf16.gmra.mxu0 %v1274
  %v1365 = vpop.f32.mrf.mxu0
  %v1366 = vadd.f32 %v1088, %v1365
  %v1367 = vpop.f32.mrf.mxu0
  %v1368 = vadd.f32 %v1092, %v1367
  %1369 = vmatmul.bf16.gmra.mxu0 %v1276
  %v1370 = vpop.f32.mrf.mxu0
  %v1371 = vadd.f32 %v1096, %v1370
  %v1372 = vpop.f32.mrf.mxu0
  %v1373 = vadd.f32 %v1100, %v1372
  %1374 = vmatmul.bf16.gmra.mxu0 %v1278
  %v1375 = vpop.f32.mrf.mxu0
  %v1376 = vadd.f32 %v1104, %v1375
  %v1377 = vpop.f32.mrf.mxu0
  %v1378 = vadd.f32 %v1108, %v1377
  %1379 = vmatmul.bf16.gmra.mxu0 %v1280
  %v1380 = vpop.f32.mrf.mxu0
  %v1381 = vadd.f32 %v1112, %v1380
  %v1382 = vpop.f32.mrf.mxu0
  %v1383 = vadd.f32 %v1116, %v1382
  %1384 = vmatmul.bf16.gmra.mxu0 %v1282
  %v1385 = vpop.f32.mrf.mxu0
  %v1386 = vadd.f32 %v1120, %v1385
  %v1387 = vpop.f32.mrf.mxu0
  %v1388 = vadd.f32 %v1124, %v1387
  %1389 = vmatmul.bf16.gmra.mxu0 %v1284
  %v1390 = vpop.f32.mrf.mxu0
  %v1391 = vadd.f32 %v1128, %v1390
  %v1392 = vpop.f32.mrf.mxu0
  %v1393 = vadd.f32 %v1132, %v1392
  %1394 = vmatmul.bf16.gmra.mxu0 %v1286
  %v1395 = vpop.f32.mrf.mxu0
  %v1396 = vadd.f32 %v1136, %v1395
  %v1397 = vpop.f32.mrf.mxu0
  %v1398 = vadd.f32 %v1140, %v1397
  %1399 = vmatmul.bf16.gmra.mxu0 %v1288
  %v1400 = vpop.f32.mrf.mxu0
  %v1401 = vadd.f32 %v1144, %v1400
  %v1402 = vpop.f32.mrf.mxu0
  %v1403 = vadd.f32 %v1148, %v1402
  %1404 = vmatmul.bf16.gmra.mxu0 %v1290
  %v1405 = vpop.f32.mrf.mxu0
  %v1406 = vadd.f32 %v1152, %v1405
  %v1407 = vpop.f32.mrf.mxu0
  %v1408 = vadd.f32 %v1156, %v1407
  %1409 = vmatmul.bf16.gmra.mxu0 %v1292
  %v1410 = vpop.f32.mrf.mxu0
  %v1411 = vadd.f32 %v1160, %v1410
  %v1412 = vpop.f32.mrf.mxu0
  %v1413 = vadd.f32 %v1164, %v1412
  %1414 = vdwg.mxu0
  %1415 = vmatpush.bf16.msra.mxu0 %v1005
  %1416 = vmatpush.bf16.msra.mxu0 %v1004
  %1417 = vmatpush.bf16.msra.mxu0 %v1003
  %1418 = vmatpush.bf16.msra.mxu0 %v1002
  %1419 = vmatpush.bf16.msra.mxu0 %v1001
  %1420 = vmatpush.bf16.msra.mxu0 %v1000
  %1421 = vmatpush.bf16.msra.mxu0 %v999
  %1422 = vmatpush.bf16.msra.mxu0 %v998
  %1423 = vmatmul.bf16.gmra.mxu0 %v1263
  %v1424 = vpop.f32.mrf.mxu0
  %v1425 = vadd.f32 %v1336, %v1424
  %v1426 = vpop.f32.mrf.mxu0
  %v1427 = vadd.f32 %v1338, %v1426
  %1428 = vmatmul.bf16.gmra.mxu0 %v1265
  %v1429 = vpop.f32.mrf.mxu0
  %v1430 = vadd.f32 %v1341, %v1429
  %v1431 = vpop.f32.mrf.mxu0
  %v1432 = vadd.f32 %v1343, %v1431
  %1433 = vmatmul.bf16.gmra.mxu0 %v1267
  %v1434 = vpop.f32.mrf.mxu0
  %v1435 = vadd.f32 %v1346, %v1434
  %v1436 = vpop.f32.mrf.mxu0
  %v1437 = vadd.f32 %v1348, %v1436
  %1438 = vmatmul.bf16.gmra.mxu0 %v1269
  %v1439 = vpop.f32.mrf.mxu0
  %v1440 = vadd.f32 %v1351, %v1439
  %v1441 = vpop.f32.mrf.mxu0
  %v1442 = vadd.f32 %v1353, %v1441
  %1443 = vmatmul.bf16.gmra.mxu0 %v1271
  %v1444 = vpop.f32.mrf.mxu0
  %v1445 = vadd.f32 %v1356, %v1444
  %v1446 = vpop.f32.mrf.mxu0
  %v1447 = vadd.f32 %v1358, %v1446
  %1448 = vmatmul.bf16.gmra.mxu0 %v1273
  %v1449 = vpop.f32.mrf.mxu0
  %v1450 = vadd.f32 %v1361, %v1449
  %v1451 = vpop.f32.mrf.mxu0
  %v1452 = vadd.f32 %v1363, %v1451
  %1453 = vmatmul.bf16.gmra.mxu0 %v1275
  %v1454 = vpop.f32.mrf.mxu0
  %v1455 = vadd.f32 %v1366, %v1454
  %v1456 = vpop.f32.mrf.mxu0
  %v1457 = vadd.f32 %v1368, %v1456
  %1458 = vmatmul.bf16.gmra.mxu0 %v1277
  %v1459 = vpop.f32.mrf.mxu0
  %v1460 = vadd.f32 %v1371, %v1459
  %v1461 = vpop.f32.mrf.mxu0
  %v1462 = vadd.f32 %v1373, %v1461
  %1463 = vmatmul.bf16.gmra.mxu0 %v1279
  %v1464 = vpop.f32.mrf.mxu0
  %v1465 = vadd.f32 %v1376, %v1464
  %v1466 = vpop.f32.mrf.mxu0
  %v1467 = vadd.f32 %v1378, %v1466
  %1468 = vmatmul.bf16.gmra.mxu0 %v1281
  %v1469 = vpop.f32.mrf.mxu0
  %v1470 = vadd.f32 %v1381, %v1469
  %v1471 = vpop.f32.mrf.mxu0
  %v1472 = vadd.f32 %v1383, %v1471
  %1473 = vmatmul.bf16.gmra.mxu0 %v1283
  %v1474 = vpop.f32.mrf.mxu0
  %v1475 = vadd.f32 %v1386, %v1474
  %v1476 = vpop.f32.mrf.mxu0
  %v1477 = vadd.f32 %v1388, %v1476
  %1478 = vmatmul.bf16.gmra.mxu0 %v1285
  %v1479 = vpop.f32.mrf.mxu0
  %v1480 = vadd.f32 %v1391, %v1479
  %v1481 = vpop.f32.mrf.mxu0
  %v1482 = vadd.f32 %v1393, %v1481
  %1483 = vmatmul.bf16.gmra.mxu0 %v1287
  %v1484 = vpop.f32.mrf.mxu0
  %v1485 = vadd.f32 %v1396, %v1484
  %v1486 = vpop.f32.mrf.mxu0
  %v1487 = vadd.f32 %v1398, %v1486
  %1488 = vmatmul.bf16.gmra.mxu0 %v1289
  %v1489 = vpop.f32.mrf.mxu0
  %v1490 = vadd.f32 %v1401, %v1489
  %v1491 = vpop.f32.mrf.mxu0
  %v1492 = vadd.f32 %v1403, %v1491
  %1493 = vmatmul.bf16.gmra.mxu0 %v1291
  %v1494 = vpop.f32.mrf.mxu0
  %v1495 = vadd.f32 %v1406, %v1494
  %v1496 = vpop.f32.mrf.mxu0
  %v1497 = vadd.f32 %v1408, %v1496
  %1498 = vmatmul.bf16.gmra.mxu0 %v1293
  %v1499 = vpop.f32.mrf.mxu0
  %v1500 = vadd.f32 %v1411, %v1499
  %v1501 = vpop.f32.mrf.mxu0
  %v1502 = vadd.f32 %v1413, %v1501
  %1503 = vdwg.mxu0
  %v1504 = vmax.f32 %v1425, 0.0
  %v1505 = vmax.f32 %v1427, 0.0
  %v1506 = vmax.f32 %v1430, 0.0
  %v1507 = vmax.f32 %v1432, 0.0
  %v1508 = vmax.f32 %v1435, 0.0
  %v1509 = vmax.f32 %v1437, 0.0
  %v1510 = vmax.f32 %v1440, 0.0
  %v1511 = vmax.f32 %v1442, 0.0
  %v1512 = vmax.f32 %v1445, 0.0
  %v1513 = vmax.f32 %v1447, 0.0
  %v1514 = vmax.f32 %v1450, 0.0
  %v1515 = vmax.f32 %v1452, 0.0
  %v1516 = vmax.f32 %v1455, 0.0
  %v1517 = vmax.f32 %v1457, 0.0
  %v1518 = vmax.f32 %v1460, 0.0
  %v1519 = vmax.f32 %v1462, 0.0
  %v1520 = vmax.f32 %v1465, 0.0
  %v1521 = vmax.f32 %v1467, 0.0
  %v1522 = vmax.f32 %v1470, 0.0
  %v1523 = vmax.f32 %v1472, 0.0
  %v1524 = vmax.f32 %v1475, 0.0
  %v1525 = vmax.f32 %v1477, 0.0
  %v1526 = vmax.f32 %v1480, 0.0
  %v1527 = vmax.f32 %v1482, 0.0
  %v1528 = vmax.f32 %v1485, 0.0
  %v1529 = vmax.f32 %v1487, 0.0
  %v1530 = vmax.f32 %v1490, 0.0
  %v1531 = vmax.f32 %v1492, 0.0
  %v1532 = vmax.f32 %v1495, 0.0
  %v1533 = vmax.f32 %v1497, 0.0
  %v1534 = vmax.f32 %v1500, 0.0
  %v1535 = vmax.f32 %v1502, 0.0
  %v1536 = vpack.c.bf16 %v1505, %v1504
  %v1537 = vpack.c.bf16 %v1507, %v1506
  %v1538 = vpack.c.bf16 %v1509, %v1508
  %v1539 = vpack.c.bf16 %v1511, %v1510
  %v1540 = vpack.c.bf16 %v1513, %v1512
  %v1541 = vpack.c.bf16 %v1515, %v1514
  %v1542 = vpack.c.bf16 %v1517, %v1516
  %v1543 = vpack.c.bf16 %v1519, %v1518
  %v1544 = vpack.c.bf16 %v1521, %v1520
  %v1545 = vpack.c.bf16 %v1523, %v1522
  %v1546 = vpack.c.bf16 %v1525, %v1524
  %v1547 = vpack.c.bf16 %v1527, %v1526
  %v1548 = vpack.c.bf16 %v1529, %v1528
  %v1549 = vpack.c.bf16 %v1531, %v1530
  %v1550 = vpack.c.bf16 %v1533, %v1532
  %v1551 = vpack.c.bf16 %v1535, %v1534
  %v1552 = vld [vmem:[%s4] sm:$0x3]
  %s1553 = sld [smem:[#allocation2]]
  %v1554 = vstv %s1553
  %1556 = vst [vmem:[#allocation1] ss:$9 sm:$0xff] %v1552
  %v1557 = vld [vmem:[#allocation1] sm:$0xff]
  %v1558 = vld [vmem:[#allocation1 + $0x9] sm:$0xff]
  %1561 = vmatpush.bf16.msra.mxu0 %v1543
  %1562 = vmatpush.bf16.msra.mxu0 %v1542
  %1563 = vmatpush.bf16.msra.mxu0 %v1541
  %1564 = vmatpush.bf16.msra.mxu0 %v1540
  %1565 = vmatpush.bf16.msra.mxu0 %v1539
  %1566 = vmatpush.bf16.msra.mxu0 %v1538
  %1567 = vmatpush.bf16.msra.mxu0 %v1537
  %1568 = vmatpush.bf16.msra.mxu0 %v1536
  %1569 = vmatmul.bf16.gmra.mxu0 %v1557
  %v1570 = vpop.f32.mrf.mxu0
  %v1571 = vadd.f32 %v1554, %v1570
  %v1572 = vpop.f32.mrf.mxu0
  %1573 = vdwg.mxu0
  %1574 = vmatpush.bf16.msra.mxu0 %v1551
  %1575 = vmatpush.bf16.msra.mxu0 %v1550
  %1576 = vmatpush.bf16.msra.mxu0 %v1549
  %1577 = vmatpush.bf16.msra.mxu0 %v1548
  %1578 = vmatpush.bf16.msra.mxu0 %v1547
  %1579 = vmatpush.bf16.msra.mxu0 %v1546
  %1580 = vmatpush.bf16.msra.mxu0 %v1545
  %1581 = vmatpush.bf16.msra.mxu0 %v1544
  %1582 = vmatmul.bf16.gmra.mxu0 %v1558
  %v1583 = vpop.f32.mrf.mxu0
  %v1584 = vadd.f32 %v1571, %v1583
  %v1585 = vpop.f32.mrf.mxu0
  %1586 = vdwg.mxu0
  %1587 = vst [vmem:[%s6] sm:$0x1] %v1584
  // Predicated region
  $region26: #{net_forward.1} parent=0 // pred_check
    _
  $region27: #{net_forward.1} parent=0 // pred_check_branch
    %1589 = sbr.rel (0) target = $region29
  $region28: #{net_forward.1} parent=0 // pred_region
    _
  $region29: #{net_forward.1} parent=0 // pred_fallthru
    _
  // Predicated region
  $region30: #{net_forward.1} parent=0 // pred_check
    _
  $region31: #{net_forward.1} parent=0 // pred_check_branch
    %1591 = sbr.rel (0) target = $region33
  $region32: #{net_forward.1} parent=0 // pred_region
    _
  $region33: #{net_forward.1} parent=0 // pred_fallthru
    _

</llo_original>
